<compile_context>
chip_gen: v6e
topology: v6e:2x2x1
jax: 0.10.0
libtpu: 0.0.40
codegen_flags: <defaults>
</compile_context>

<pallas_src>
import jax
import jax.numpy as jnp
from jax.experimental import pallas as pl
from jax.experimental.pallas import tpu as pltpu

_LANE = 128
_SUBLANE = 8
_TARGET_BLOCK_BYTES = 1 << 20  # ~1 MiB per buffer per step


def _round_up(x, m):
    return (x + m - 1) // m * m


def _clip_kernel(x_ref, lo_ref, hi_ref, out_ref):
    """out = min(max(x, lo), hi); lo/hi are (1, C) f32 rows broadcast over sublanes."""
    x = x_ref[...]
    if x.dtype == jnp.float32:
        out_ref[...] = jnp.minimum(jnp.maximum(x, lo_ref[...]), hi_ref[...])
    else:
        # Compute the clamp in f32 (exact bounds), cast back on store.  Free
        # filler under memory-bound slack.
        y = jnp.minimum(jnp.maximum(x.astype(jnp.float32), lo_ref[...]), hi_ref[...])
        out_ref[...] = y.astype(out_ref.dtype)


def _bounds_rows(c, width, height):
    """(1, c) f32 lower/upper clamp bounds; pattern repeats every 4 lanes."""
    coord = jnp.arange(c, dtype=jnp.int32) & 3  # 0:x1 1:y1 2:x2 3:y2
    lo = jnp.where(coord < 2, 0.0, -jnp.inf).astype(jnp.float32)
    hi = jnp.where(
        coord == 2,
        jnp.float32(width),
        jnp.where(coord == 3, jnp.float32(height), jnp.inf),
    ).astype(jnp.float32)
    return lo[None, :], hi[None, :]


def _row_block(rows, cols, itemsize):
    """Rows per block: multiple of 8, ~1 MiB, >= 2 grid steps when possible."""
    tr = max(_SUBLANE, (_TARGET_BLOCK_BYTES // (cols * itemsize)) // _SUBLANE * _SUBLANE)
    tr = min(tr, _round_up(rows, _SUBLANE))
    if tr >= rows and rows > _SUBLANE:  # keep both v7x TensorCores busy
        tr = max(_SUBLANE, _round_up(pl.cdiv(rows, 2), _SUBLANE))
    return tr


def _lane_block(rows, cols, itemsize):
    """Lanes per block: multiple of 128, ~1 MiB, >= 2 grid steps when possible."""
    tc = max(_LANE, (_TARGET_BLOCK_BYTES // (max(rows, 1) * itemsize)) // _LANE * _LANE)
    tc = min(tc, _round_up(cols, _LANE))
    if tc >= cols and cols > _LANE:
        tc = max(_LANE, _round_up(pl.cdiv(cols, 2), _LANE))
    return tc


def clip_boxes(boxes, img):
    """boxes: (B, N, 4), img: (B, C, H, W) -> clipped boxes (B, N, 4)."""
    B, N, four = boxes.shape
    assert four == 4, "boxes must have 4 coordinates in the last dim"
    assert jnp.issubdtype(boxes.dtype, jnp.floating), "boxes must be floating point"
    _, _, height, width = img.shape  # static Python ints (shapes are static)

    dtype = boxes.dtype
    itemsize = jnp.dtype(dtype).itemsize
    L = N * 4
    T = B * L

    # Prefer a fully (sublane, lane)-dense (M, C) slab; C % 4 == 0 keeps the
    # lane-position -> coordinate mapping intact.
    dense_cols = None
    for c in (512, 1024, 256, 128):
        if T % c == 0 and T // c >= _SUBLANE:
            dense_cols = c
            break

    if dense_cols is not None:
        rows, cols = T // dense_cols, dense_cols
        flat = boxes.reshape(rows, cols)  # contiguous reshape, no pad
        tr = _row_block(rows, cols, itemsize)
        grid = (pl.cdiv(rows, tr),)
        x_spec = pl.BlockSpec((tr, cols), lambda i: (i, 0))
        b_spec = pl.BlockSpec((1, cols), lambda i: (0, 0))
        lo, hi = _bounds_rows(cols, width, height)
    else:
        # Fallback (B*N*4 not a multiple of 128): lane-tiled (B, N*4) slab;
        # Pallas masks the ragged edge block, so still no pad / slice.
        rows, cols = B, L
        flat = boxes.reshape(rows, cols)
        tc = _lane_block(rows, cols, itemsize)
        grid = (pl.cdiv(cols, tc),)
        x_spec = pl.BlockSpec((rows, tc), lambda j: (0, j))
        b_spec = pl.BlockSpec((1, tc), lambda j: (0, 0))
        lo, hi = _bounds_rows(tc, width, height)

    out_flat = pl.pallas_call(
        _clip_kernel,
        out_shape=jax.ShapeDtypeStruct((rows, cols), dtype),
        grid=grid,
        in_specs=[x_spec, b_spec, b_spec],
        out_specs=x_spec,
        input_output_aliases={0: 0},  # same-shape elementwise: update in place
        compiler_params=pltpu.CompilerParams(dimension_semantics=("parallel",)),
    )(flat, lo, hi)

    return out_flat.reshape(B, N, 4)


def _clip_boxes_ref(boxes, img):
    _, _, height, width = img.shape
    x1 = jnp.maximum(boxes[:, :, 0], 0.0)
    y1 = jnp.maximum(boxes[:, :, 1], 0.0)
    x2 = jnp.minimum(boxes[:, :, 2], float(width))
    y2 = jnp.minimum(boxes[:, :, 3], float(height))
    return jnp.stack([x1, y1, x2, y2], axis=2)


if __name__ == "__main__":
    key = jax.random.PRNGKey(0)
    k1, k2 = jax.random.split(key, 2)

    clip_boxes_jit = jax.jit(clip_boxes)

    # Small shapes consistent with the module: batch of 2 images, 256 boxes.
    B, N = 2, 256
    img = jnp.zeros((B, 3, 24, 40), jnp.float32)  # only the shape matters (H=24, W=40)

    # Boxes spanning negative / out-of-image values so clipping is exercised.
    boxes = jax.random.uniform(k1, (B, N, 4), jnp.float32, -20.0, 60.0)

    out = jax.block_until_ready(clip_boxes_jit(boxes, img))
    ref = _clip_boxes_ref(boxes, img)
    assert out.shape == (B, N, 4) and out.dtype == jnp.float32
    assert jnp.allclose(out, ref, rtol=0.0, atol=0.0)

    # Second check: B*N*4 not a multiple of 128 (exercises the ragged,
    # pad-free fallback path with a masked edge block).
    N2 = 37
    boxes2 = jax.random.uniform(k2, (B, N2, 4), jnp.float32, -20.0, 60.0)
    out2 = jax.block_until_ready(clip_boxes_jit(boxes2, img))
    ref2 = _clip_boxes_ref(boxes2, img)
    assert out2.shape == (B, N2, 4)
    assert jnp.allclose(out2, ref2, rtol=0.0, atol=0.0)

    print("KERNEL_OK")
</pallas_src>

<mosaic_0001>
module attributes {stable_mosaic.version = 11 : i64} {
  func.func @_clip_kernel(%arg0: i32, %arg1: memref<8x256xf32, #tpu.memory_space<vmem>>, %arg2: memref<1x256xf32, #tpu.memory_space<vmem>>, %arg3: memref<1x256xf32, #tpu.memory_space<vmem>>, %arg4: memref<8x256xf32, #tpu.memory_space<vmem>>) attributes {dimension_semantics = [#tpu.dimension_semantics<parallel>], iteration_bounds = array<i64: 1>, scalar_prefetch = 0 : i64, scratch_operands = 0 : i64, tpu.core_type = #tpu.core_type<tc>, window_params = [{transform_indices = @transform_0, window_bounds = array<i64: 8, 256>}, {pipeline_mode = #tpu.pipeline_mode<synchronous>, transform_indices = @transform_1, window_bounds = array<i64: 1, 256>}, {pipeline_mode = #tpu.pipeline_mode<synchronous>, transform_indices = @transform_2, window_bounds = array<i64: 1, 256>}, {transform_indices = @transform_3, window_bounds = array<i64: 8, 256>}]} {
    %c0 = arith.constant 0 : index
    %c0_0 = arith.constant 0 : index
    %0 = vector.load %arg1[%c0, %c0_0] : memref<8x256xf32, #tpu.memory_space<vmem>>, vector<8x256xf32>
    %c0_1 = arith.constant 0 : index
    %c0_2 = arith.constant 0 : index
    %1 = vector.load %arg2[%c0_1, %c0_2] : memref<1x256xf32, #tpu.memory_space<vmem>>, vector<1x256xf32>
    %2 = vector.broadcast %1 : vector<1x256xf32> to vector<8x256xf32>
    %3 = arith.maximumf %0, %2 : vector<8x256xf32>
    %c0_3 = arith.constant 0 : index
    %c0_4 = arith.constant 0 : index
    %4 = vector.load %arg3[%c0_3, %c0_4] : memref<1x256xf32, #tpu.memory_space<vmem>>, vector<1x256xf32>
    %5 = vector.broadcast %4 : vector<1x256xf32> to vector<8x256xf32>
    %6 = arith.minimumf %3, %5 : vector<8x256xf32>
    %c0_5 = arith.constant 0 : index
    %c0_6 = arith.constant 0 : index
    %7 = vector.load %arg4[%c0_5, %c0_6] : memref<8x256xf32, #tpu.memory_space<vmem>>, vector<8x256xf32>
    tpu.vector_store %arg4[%c0_5, %c0_6], %6 {strides = array<i32>} : memref<8x256xf32, #tpu.memory_space<vmem>>, vector<8x256xf32>,
    return
  }
  func.func @transform_0(%arg0: i32) -> (i32, i32) {
    %c0_i32 = arith.constant 0 : i32
    %c0_i32_0 = arith.constant 0 : i32
    return %arg0, %c0_i32 : i32, i32
  }
  func.func @transform_1(%arg0: i32) -> (i32, i32) {
    %c0_i32 = arith.constant 0 : i32
    %c0_i32_0 = arith.constant 0 : i32
    %c0_i32_1 = arith.constant 0 : i32
    return %c0_i32, %c0_i32_0 : i32, i32
  }
  func.func @transform_2(%arg0: i32) -> (i32, i32) {
    %c0_i32 = arith.constant 0 : i32
    %c0_i32_0 = arith.constant 0 : i32
    %c0_i32_1 = arith.constant 0 : i32
    return %c0_i32, %c0_i32_0 : i32, i32
  }
  func.func @transform_3(%arg0: i32) -> (i32, i32) {
    %c0_i32 = arith.constant 0 : i32
    %c0_i32_0 = arith.constant 0 : i32
    return %arg0, %c0_i32 : i32, i32
  }
}

</mosaic_0001>

<llo_original>
// kernel: clip_boxes.1
$region0: #{clip_boxes.1}
  #allocation0 [shape = 'u32[]', space=smem, size = 0x4, offset = 0x4, fixed_abs, tag = 'smem constant byte address 0x4 - core index']
  #allocation1 [shape = 'u32[144,128]{1,0:T(1,128)}', space=vmem, size = 0x12000, scoped, tag = 'internal scratch']
  %s0 = inlined_call_operand.vmem [shape: f32[8,256], index: 0, kind: input, shape index: {}, may-alias: {0,3}]
  %s1 = inlined_call_operand.vmem [shape: f32[1,256], index: 1, kind: input, shape index: {}]
  %s2 = inlined_call_operand.vmem [shape: f32[1,256], index: 2, kind: input, shape index: {}]
  %s3 = inlined_call_operand.vmem [shape: f32[8,256], index: 3, kind: output, shape index: {}, may-alias: {0,3}]
  %s4 = sld [smem:[#allocation0]]
  $region22: #{clip_boxes.1} parent=0
    _
  %s6 = ssub.s32 1, %s4
  %s7 = scalar_select 0, %s6, %s4
  // Predicated region
  $region2: #{clip_boxes.1} parent=0 // pred_check
    _
  $region3: #{clip_boxes.1} parent=0 // pred_check_branch
    %9 = sbr.rel (0) target = $region5
  $region4: #{clip_boxes.1} parent=0 // pred_region
    _
  $region5: #{clip_boxes.1} parent=0 // pred_fallthru
    _
  // Predicated region
  $region6: #{clip_boxes.1} parent=0 // pred_check
    _
  $region7: #{clip_boxes.1} parent=0 // pred_check_branch
    %11 = sbr.rel (0) target = $region9
  $region8: #{clip_boxes.1} parent=0 // pred_region
    _
  $region9: #{clip_boxes.1} parent=0 // pred_fallthru
    _
  // Predicated region
  $region10: #{clip_boxes.1} parent=0 // pred_check
    _
  $region11: #{clip_boxes.1} parent=0 // pred_check_branch
    %13 = sbr.rel (0) target = $region13
  $region12: #{clip_boxes.1} parent=0 // pred_region
    _
  $region13: #{clip_boxes.1} parent=0 // pred_fallthru
    _
  %v14 = vld [vmem:[%s0] sm:$0xff]
  %v15 = vld [vmem:[%s0 + $0x8] sm:$0xff]
  %v16 = vld [vmem:[%s1] sm:$0x3]
  %v18 = vlaneseq
  %v19 = vshrl.u32 %v18, 7
  %v20 = vsub.s32 0, %v19
  %v21 = vrot.slane %v16, %v20
  %v22 = vlaneseq
  %v23 = vshrl.u32 %v22, 7
  %v24 = vsub.s32 1, %v23
  %v25 = vrot.slane %v16, %v24
  %v28 = vmax.f32 %v14, %v21
  %v29 = vmax.f32 %v15, %v25
  %v30 = vld [vmem:[%s2] sm:$0x3]
  %v32 = vlaneseq
  %v33 = vshrl.u32 %v32, 7
  %v34 = vsub.s32 0, %v33
  %v35 = vrot.slane %v30, %v34
  %v36 = vlaneseq
  %v37 = vshrl.u32 %v36, 7
  %v38 = vsub.s32 1, %v37
  %v39 = vrot.slane %v30, %v38
  %v42 = vmin.f32 %v28, %v35
  %v43 = vmin.f32 %v29, %v39
  %44 = vst [vmem:[%s3] sm:$0xff] %v42
  %45 = vst [vmem:[%s3 + $0x8] sm:$0xff] %v43
  // Predicated region
  $region14: #{clip_boxes.1} parent=0 // pred_check
    _
  $region15: #{clip_boxes.1} parent=0 // pred_check_branch
    %47 = sbr.rel (0) target = $region17
  $region16: #{clip_boxes.1} parent=0 // pred_region
    _
  $region17: #{clip_boxes.1} parent=0 // pred_fallthru
    _
  // Predicated region
  $region18: #{clip_boxes.1} parent=0 // pred_check
    _
  $region19: #{clip_boxes.1} parent=0 // pred_check_branch
    %49 = sbr.rel (0) target = $region21
  $region20: #{clip_boxes.1} parent=0 // pred_region
    _
  $region21: #{clip_boxes.1} parent=0 // pred_fallthru
    _

</llo_original>
